<compile_context>
chip_gen: v5e
topology: v5e:2x2
jax: 0.10.0
libtpu: 0.0.40
codegen_flags: <defaults>
</compile_context>

<pallas_src>
import functools

import jax
import jax.numpy as jnp
from jax import lax
from jax.experimental import pallas as pl
from jax.experimental.pallas import tpu as pltpu


def _round_up(x, m):
    return ((x + m - 1) // m) * m


# --------------------------------------------------------------------------
# Kernel: fused twin MLP.  slab layout (rows, w) with w = 2*mlp_dim:
#   [0              : p_in)        layer-1 state rows   [Q1.W1s | Q2.W1s]
#   [p_in           : p_in+p_act)  layer-1 action rows  [Q1.W1a | Q2.W1a]
#   [...            : ... + w)     layer-2 block-diagonal
#   [...            : ... + w)     layer-3 block-diagonal (first 2*half cols)
#   [...            : ... + 8)     layer-4 TRANSPOSED heads (rows 0/1)
#   [...            : ... + 8)     biases: rows 0..2 = fused b1..b3,
#                                  rows 3/4 col 0 = b4 of Q1 / Q2
# --------------------------------------------------------------------------
def _twinned_q_kernel(state_ref, action_ref, slab_ref, out_ref, *,
                      p_in, p_act, mlp_dim):
    w = 2 * mlp_dim
    cd = jnp.bfloat16                         # MXU-native operand dtype

    r = 0
    w1s = slab_ref[r:r + p_in, :]             # (p_in, w)   8-aligned rows
    r += p_in
    w1a = slab_ref[r:r + p_act, :]            # (p_act, w)  8-aligned rows
    r += p_act
    w2 = slab_ref[r:r + w, :]                 # (w, w)
    r += w
    w3 = slab_ref[r:r + w, :]                 # (w, w)
    r += w
    w4t = slab_ref[r:r + 8, :]                # (8, w): rows 0/1 = heads
    r += 8
    bias = slab_ref[r:r + 8, :].astype(jnp.float32)
    b1 = bias[0:1, :]
    b2 = bias[1:2, :]
    b3 = bias[2:3, :]
    b4 = bias[3:5, 0:1]                       # (2, 1): [b4_q1; b4_q2]

    s = state_ref[...].astype(cd)
    a = action_ref[...].astype(cd)

    # f32 accumulation / f32 tanh (portable to v5e), bf16 matmul operands.
    h = jnp.tanh(
        jnp.dot(s, w1s, preferred_element_type=jnp.float32)
        + jnp.dot(a, w1a, preferred_element_type=jnp.float32)
        + b1)
    h = jnp.tanh(jnp.dot(h.astype(cd), w2, preferred_element_type=jnp.float32) + b2)
    h = jnp.tanh(jnp.dot(h.astype(cd), w3, preferred_element_type=jnp.float32) + b3)

    # Layer 4 computed with transposed heads (contract the shared feature dim
    # of both operands) so the result is already lane-dense (rows, batch).
    q_t = lax.dot_general(
        w4t, h.astype(cd),
        dimension_numbers=(((1,), (1,)), ((), ())),
        preferred_element_type=jnp.float32)   # (8, bt); rows 2..7 are zero
    out_ref[...] = (q_t[0:2, :] + b4).astype(out_ref.dtype)


# --------------------------------------------------------------------------
# Per-layer parameter init (PyTorch nn.Linear default init, weights stored in
# (in, out) layout so the math is x @ W + b).
# --------------------------------------------------------------------------
def _init_linear(key, in_dim, out_dim, dtype=jnp.float32):
    kw, kb = jax.random.split(key)
    bound = 1.0 / (in_dim ** 0.5)
    w = jax.random.uniform(kw, (in_dim, out_dim), dtype, -bound, bound)
    b = jax.random.uniform(kb, (1, out_dim), dtype, -bound, bound)
    return w, b


def init_twinned_q_params(key, input_dim, mlp_dim, n_actions):
    dims = [
        (input_dim + n_actions, mlp_dim),
        (mlp_dim, mlp_dim),
        (mlp_dim, mlp_dim // 2),
        (mlp_dim // 2, 1),
    ]
    keys = jax.random.split(key, 8)
    params = []
    for k, (di, do) in zip(keys[:4], dims):   # Q1
        params.extend(_init_linear(k, di, do))
    for k, (di, do) in zip(keys[4:], dims):   # Q2
        params.extend(_init_linear(k, di, do))
    return tuple(params)


# --------------------------------------------------------------------------
# One-time packing of the 16 per-layer arrays into a single fused bf16 slab.
# --------------------------------------------------------------------------
def pack_twinned_q_params(params, input_dim, mlp_dim, n_actions,
                          dtype=jnp.bfloat16):
    assert mlp_dim % 2 == 0, "mlp_dim must be even (fc3 width is mlp_dim // 2)"
    (w11, b11, w12, b12, w13, b13, w14, b14,
     w21, b21, w22, b22, w23, b23, w24, b24) = params
    w = 2 * mlp_dim
    half = mlp_dim // 2
    p_in = _round_up(input_dim, 8)
    p_act = _round_up(n_actions, 8)
    rows = p_in + p_act + 2 * w + 16
    slab = jnp.zeros((rows, w), jnp.float32)

    r = 0
    # layer 1 (output-dim concat): state rows then (padded) action rows
    slab = slab.at[r:r + input_dim, 0:mlp_dim].set(w11[:input_dim])
    slab = slab.at[r:r + input_dim, mlp_dim:w].set(w21[:input_dim])
    r += p_in
    slab = slab.at[r:r + n_actions, 0:mlp_dim].set(w11[input_dim:])
    slab = slab.at[r:r + n_actions, mlp_dim:w].set(w21[input_dim:])
    r += p_act
    # layer 2: block-diagonal
    slab = slab.at[r:r + mlp_dim, 0:mlp_dim].set(w12)
    slab = slab.at[r + mlp_dim:r + w, mlp_dim:w].set(w22)
    r += w
    # layer 3: block-diagonal into first 2*half columns
    slab = slab.at[r:r + mlp_dim, 0:half].set(w13)
    slab = slab.at[r + mlp_dim:r + w, half:2 * half].set(w23)
    r += w
    # layer 4, TRANSPOSED: row 0 = Q1 head over cols 0:half, row 1 = Q2 head
    slab = slab.at[r, 0:half].set(w14[:, 0])
    slab = slab.at[r + 1, half:2 * half].set(w24[:, 0])
    r += 8
    # fused biases
    slab = slab.at[r + 0, 0:mlp_dim].set(b11[0])
    slab = slab.at[r + 0, mlp_dim:w].set(b21[0])
    slab = slab.at[r + 1, 0:mlp_dim].set(b12[0])
    slab = slab.at[r + 1, mlp_dim:w].set(b22[0])
    slab = slab.at[r + 2, 0:half].set(b13[0])
    slab = slab.at[r + 2, half:2 * half].set(b23[0])
    slab = slab.at[r + 3, 0].set(b14[0, 0])
    slab = slab.at[r + 4, 0].set(b24[0, 0])
    return slab.astype(dtype)


# --------------------------------------------------------------------------
# Wrapper: pad state/action once to 8-aligned widths, pick a large batch tile
# (>= 2 grid steps for medium/large batches so megacore sharding kicks in),
# run the kernel, split the lane-dense (2, batch) output.
# --------------------------------------------------------------------------
@jax.jit
def twinned_q_forward(state, action, slab):
    batch, input_dim = state.shape
    n_actions = action.shape[1]
    w = slab.shape[1]
    mlp_dim = w // 2
    p_in = _round_up(input_dim, 8)
    p_act = _round_up(n_actions, 8)

    # Zero-pad feature dims once; the matching slab rows are already zero.
    if p_in != input_dim:
        state = jnp.pad(state, ((0, 0), (0, p_in - input_dim)))
    if p_act != n_actions:
        action = jnp.pad(action, ((0, 0), (0, p_act - n_actions)))

    # Batch tile: few large tiles (per-grid-step overhead dominates at these
    # sizes).  bt is either == batch or a multiple of 128 (keeps the (2, bt)
    # output block lane-aligned); ~batch/2 for medium batches so the
    # "parallel" axis gives both v7x TensorCores work; capped so the (bt, w)
    # f32 intermediates stay at a few MiB.
    max_bt = min(8192, max(128, ((8 * 1024 * 1024) // (4 * w)) // 128 * 128))
    bt = min(batch, max_bt, _round_up(pl.cdiv(batch, 2), 128))
    grid = (pl.cdiv(batch, bt),)

    kernel = functools.partial(
        _twinned_q_kernel, p_in=p_in, p_act=p_act, mlp_dim=mlp_dim)

    out = pl.pallas_call(
        kernel,
        out_shape=jax.ShapeDtypeStruct((2, batch), jnp.float32),
        grid_spec=pltpu.PrefetchScalarGridSpec(
            num_scalar_prefetch=0,
            grid=grid,
            in_specs=[
                pl.BlockSpec((bt, p_in), lambda i: (i, 0)),
                pl.BlockSpec((bt, p_act), lambda i: (i, 0)),
                pl.BlockSpec(slab.shape, lambda i: (0, 0)),  # VMEM-resident params
            ],
            out_specs=pl.BlockSpec((2, bt), lambda i: (0, i)),  # lane-dense out
        ),
        compiler_params=pltpu.CompilerParams(
            dimension_semantics=("parallel",),
            vmem_limit_bytes=64 * 1024 * 1024),   # insurance for v5e's 16 MiB default
    )(state, action, slab)

    return out[0, :][:, None], out[1, :][:, None]


# --------------------------------------------------------------------------
# Pure-JAX f32 reference (mirrors the PyTorch forward exactly).
# --------------------------------------------------------------------------
def _ref_forward(state, action, params):
    x = jnp.concatenate([state, action], axis=1)

    def mlp(p):
        w1, b1, w2, b2, w3, b3, w4, b4 = p
        h = jnp.tanh(x @ w1 + b1)
        h = jnp.tanh(h @ w2 + b2)
        h = jnp.tanh(h @ w3 + b3)
        return h @ w4 + b4

    return mlp(params[:8]), mlp(params[8:])


if __name__ == "__main__":
    input_dim = 16
    n_actions = 4
    mlp_dim = 32

    key = jax.random.PRNGKey(0)
    k_state, k_action, k_params = jax.random.split(key, 3)
    params = init_twinned_q_params(k_params, input_dim, mlp_dim, n_actions)
    slab = pack_twinned_q_params(params, input_dim, mlp_dim, n_actions)

    # bf16 weights -> relaxed tolerance vs the f32 reference.
    atol = rtol = 5e-2

    # Small single-tile batch and a multi-tile batch (exercises the 128-row
    # tile, >1 grid step and the partial last tile).
    for batch in (8, 300):
        ks, ka = jax.random.split(jax.random.PRNGKey(batch))
        state = jax.random.normal(ks, (batch, input_dim), dtype=jnp.float32)
        action = jax.random.normal(ka, (batch, n_actions), dtype=jnp.float32)

        q1, q2 = twinned_q_forward(state, action, slab)
        jax.block_until_ready((q1, q2))

        r1, r2 = _ref_forward(state, action, params)
        assert q1.shape == (batch, 1) and q2.shape == (batch, 1)
        assert jnp.allclose(q1, r1, atol=atol, rtol=rtol)
        assert jnp.allclose(q2, r2, atol=atol, rtol=rtol)

    print("KERNEL_OK")
</pallas_src>

<mosaic_0001>
module attributes {stable_mosaic.version = 11 : i64} {
  func.func @_twinned_q_kernel(%arg0: i32, %arg1: memref<8x16xf32, #tpu.memory_space<vmem>>, %arg2: memref<8x8xf32, #tpu.memory_space<vmem>>, %arg3: memref<168x64xbf16, #tpu.memory_space<vmem>>, %arg4: memref<2x8xf32, #tpu.memory_space<vmem>>) attributes {dimension_semantics = [#tpu.dimension_semantics<parallel>], iteration_bounds = array<i64: 1>, scalar_prefetch = 0 : i64, scratch_operands = 0 : i64, tpu.core_type = #tpu.core_type<tc>, window_params = [{transform_indices = @transform_0, window_bounds = array<i64: 8, 16>}, {transform_indices = @transform_1, window_bounds = array<i64: 8, 8>}, {pipeline_mode = #tpu.pipeline_mode<synchronous>, transform_indices = @transform_2, window_bounds = array<i64: 168, 64>}, {transform_indices = @transform_3, window_bounds = array<i64: 2, 8>}]} {
    %c0 = arith.constant 0 : index
    %c0_0 = arith.constant 0 : index
    %0 = vector.load %arg3[%c0, %c0_0] : memref<168x64xbf16, #tpu.memory_space<vmem>>, vector<16x64xbf16>
    %c16 = arith.constant 16 : index
    %c0_1 = arith.constant 0 : index
    %1 = vector.load %arg3[%c16, %c0_1] : memref<168x64xbf16, #tpu.memory_space<vmem>>, vector<8x64xbf16>
    %c24 = arith.constant 24 : index
    %c0_2 = arith.constant 0 : index
    %2 = vector.load %arg3[%c24, %c0_2] : memref<168x64xbf16, #tpu.memory_space<vmem>>, vector<64x64xbf16>
    %c88 = arith.constant 88 : index
    %c0_3 = arith.constant 0 : index
    %3 = vector.load %arg3[%c88, %c0_3] : memref<168x64xbf16, #tpu.memory_space<vmem>>, vector<64x64xbf16>
    %c152 = arith.constant 152 : index
    %c0_4 = arith.constant 0 : index
    %4 = vector.load %arg3[%c152, %c0_4] : memref<168x64xbf16, #tpu.memory_space<vmem>>, vector<8x64xbf16>
    %c160 = arith.constant 160 : index
    %c0_5 = arith.constant 0 : index
    %5 = vector.load %arg3[%c160, %c0_5] : memref<168x64xbf16, #tpu.memory_space<vmem>>, vector<8x64xbf16>
    %6 = arith.extf %5 : vector<8x64xbf16> to vector<8x64xf32>
    %7 = vector.extract_strided_slice %6 {offsets = [0, 0], sizes = [1, 64], strides = [1, 1]} : vector<8x64xf32> to vector<1x64xf32>
    %8 = vector.extract_strided_slice %6 {offsets = [1, 0], sizes = [1, 64], strides = [1, 1]} : vector<8x64xf32> to vector<1x64xf32>
    %9 = vector.extract_strided_slice %6 {offsets = [2, 0], sizes = [1, 64], strides = [1, 1]} : vector<8x64xf32> to vector<1x64xf32>
    %10 = vector.extract_strided_slice %6 {offsets = [3, 0], sizes = [2, 1], strides = [1, 1]} : vector<8x64xf32> to vector<2x1xf32>
    %c0_6 = arith.constant 0 : index
    %c0_7 = arith.constant 0 : index
    %11 = vector.load %arg1[%c0_6, %c0_7] : memref<8x16xf32, #tpu.memory_space<vmem>>, vector<8x16xf32>
    %12 = arith.truncf %11 : vector<8x16xf32> to vector<8x16xbf16>
    %c0_8 = arith.constant 0 : index
    %c0_9 = arith.constant 0 : index
    %13 = vector.load %arg2[%c0_8, %c0_9] : memref<8x8xf32, #tpu.memory_space<vmem>>, vector<8x8xf32>
    %14 = arith.truncf %13 : vector<8x8xf32> to vector<8x8xbf16>
    %cst = arith.constant dense<0.000000e+00> : vector<8x64xf32>
    %15 = tpu.matmul %12, %0, %cst {dimension_numbers = #tpu.dot_dimension_numbers<[1], [0], [0], [1], [0, 0, 1, 1], [], []>} : vector<8x16xbf16>, vector<16x64xbf16>, vector<8x64xf32> -> vector<8x64xf32>
    %cst_10 = arith.constant dense<0.000000e+00> : vector<8x64xf32>
    %16 = tpu.matmul %14, %1, %cst_10 {dimension_numbers = #tpu.dot_dimension_numbers<[1], [0], [0], [1], [0, 0, 1, 1], [], []>} : vector<8x8xbf16>, vector<8x64xbf16>, vector<8x64xf32> -> vector<8x64xf32>
    %17 = arith.addf %15, %16 : vector<8x64xf32>
    %18 = vector.broadcast %7 : vector<1x64xf32> to vector<8x64xf32>
    %19 = arith.addf %17, %18 : vector<8x64xf32>
    %20 = math.tanh %19 : vector<8x64xf32>
    %21 = arith.truncf %20 : vector<8x64xf32> to vector<8x64xbf16>
    %cst_11 = arith.constant dense<0.000000e+00> : vector<8x64xf32>
    %22 = tpu.matmul %21, %2, %cst_11 {dimension_numbers = #tpu.dot_dimension_numbers<[1], [0], [0], [1], [0, 0, 1, 1], [], []>} : vector<8x64xbf16>, vector<64x64xbf16>, vector<8x64xf32> -> vector<8x64xf32>
    %23 = vector.broadcast %8 : vector<1x64xf32> to vector<8x64xf32>
    %24 = arith.addf %22, %23 : vector<8x64xf32>
    %25 = math.tanh %24 : vector<8x64xf32>
    %26 = arith.truncf %25 : vector<8x64xf32> to vector<8x64xbf16>
    %cst_12 = arith.constant dense<0.000000e+00> : vector<8x64xf32>
    %27 = tpu.matmul %26, %3, %cst_12 {dimension_numbers = #tpu.dot_dimension_numbers<[1], [0], [0], [1], [0, 0, 1, 1], [], []>} : vector<8x64xbf16>, vector<64x64xbf16>, vector<8x64xf32> -> vector<8x64xf32>
    %28 = vector.broadcast %9 : vector<1x64xf32> to vector<8x64xf32>
    %29 = arith.addf %27, %28 : vector<8x64xf32>
    %30 = math.tanh %29 : vector<8x64xf32>
    %31 = arith.truncf %30 : vector<8x64xf32> to vector<8x64xbf16>
    %cst_13 = arith.constant dense<0.000000e+00> : vector<8x8xf32>
    %32 = tpu.matmul %4, %31, %cst_13 {dimension_numbers = #tpu.dot_dimension_numbers<[1], [1], [0], [0], [0, 0, 1, 0], [], []>} : vector<8x64xbf16>, vector<8x64xbf16>, vector<8x8xf32> -> vector<8x8xf32>
    %33 = vector.extract_strided_slice %32 {offsets = [0, 0], sizes = [2, 8], strides = [1, 1]} : vector<8x8xf32> to vector<2x8xf32>
    %34 = vector.broadcast %10 : vector<2x1xf32> to vector<2x8xf32>
    %35 = arith.addf %33, %34 : vector<2x8xf32>
    %c0_14 = arith.constant 0 : index
    %c0_15 = arith.constant 0 : index
    %36 = vector.load %arg4[%c0_14, %c0_15] : memref<2x8xf32, #tpu.memory_space<vmem>>, vector<2x8xf32>
    tpu.vector_store %arg4[%c0_14, %c0_15], %35 {strides = array<i32>} : memref<2x8xf32, #tpu.memory_space<vmem>>, vector<2x8xf32>,
    return
  }
  func.func @transform_0(%arg0: i32) -> (i32, i32) {
    %c0_i32 = arith.constant 0 : i32
    %c0_i32_0 = arith.constant 0 : i32
    return %arg0, %c0_i32 : i32, i32
  }
  func.func @transform_1(%arg0: i32) -> (i32, i32) {
    %c0_i32 = arith.constant 0 : i32
    %c0_i32_0 = arith.constant 0 : i32
    return %arg0, %c0_i32 : i32, i32
  }
  func.func @transform_2(%arg0: i32) -> (i32, i32) {
    %c0_i32 = arith.constant 0 : i32
    %c0_i32_0 = arith.constant 0 : i32
    %c0_i32_1 = arith.constant 0 : i32
    return %c0_i32, %c0_i32_0 : i32, i32
  }
  func.func @transform_3(%arg0: i32) -> (i32, i32) {
    %c0_i32 = arith.constant 0 : i32
    %c0_i32_0 = arith.constant 0 : i32
    return %c0_i32, %arg0 : i32, i32
  }
}

</mosaic_0001>

<llo_original>
// kernel: twinned_q_forward.1
$region0: #{twinned_q_forward.1}
  #allocation0 [shape = 'u32[]', space=smem, size = 0x4, offset = 0x4, fixed_abs, tag = 'smem constant byte address 0x4 - core index']
  #allocation1 [shape = 'u32[72,128]{1,0:T(1,128)}', space=vmem, size = 0x9000, scoped, tag = 'internal scratch']
  %s0 = inlined_call_operand.vmem [shape: f32[8,16], index: 0, kind: input, shape index: {}]
  %s1 = inlined_call_operand.vmem [shape: f32[8,8], index: 1, kind: input, shape index: {}]
  %s2 = inlined_call_operand.vmem [shape: bf16[168,64], index: 2, kind: input, shape index: {}]
  %s3 = inlined_call_operand.vmem [shape: f32[2,8], index: 3, kind: output, shape index: {}]
  %s4 = sld [smem:[#allocation0]]
  $region22: #{twinned_q_forward.1} parent=0
    _
  %s6 = ssub.s32 1, %s4
  %s7 = scalar_select 0, %s6, %s4
  // Predicated region
  $region2: #{twinned_q_forward.1} parent=0 // pred_check
    _
  $region3: #{twinned_q_forward.1} parent=0 // pred_check_branch
    %9 = sbr.rel (0) target = $region5
  $region4: #{twinned_q_forward.1} parent=0 // pred_region
    _
  $region5: #{twinned_q_forward.1} parent=0 // pred_fallthru
    _
  // Predicated region
  $region6: #{twinned_q_forward.1} parent=0 // pred_check
    _
  $region7: #{twinned_q_forward.1} parent=0 // pred_check_branch
    %11 = sbr.rel (0) target = $region9
  $region8: #{twinned_q_forward.1} parent=0 // pred_region
    _
  $region9: #{twinned_q_forward.1} parent=0 // pred_fallthru
    _
  // Predicated region
  $region10: #{twinned_q_forward.1} parent=0 // pred_check
    _
  $region11: #{twinned_q_forward.1} parent=0 // pred_check_branch
    %13 = sbr.rel (0) target = $region13
  $region12: #{twinned_q_forward.1} parent=0 // pred_region
    _
  $region13: #{twinned_q_forward.1} parent=0 // pred_fallthru
    _
  %v15 = vld [vmem:[%s2] sm:$0xf]
  %v16 = vld [vmem:[%s2 + $0x4] sm:$0xf]
  %v17 = vld [vmem:[%s2 + $0x8] sm:$0xf]
  %v18 = vld [vmem:[%s2 + $0xc] sm:$0xf]
  %v19 = vld [vmem:[%s2 + $0x10] sm:$0xf]
  %v20 = vld [vmem:[%s2 + $0x14] sm:$0xf]
  %v21 = vld [vmem:[%s2 + $0x18] sm:$0xf]
  %v22 = vld [vmem:[%s2 + $0x1c] sm:$0xf]
  %v23 = vld [vmem:[%s2 + $0x20] sm:$0xf]
  %v24 = vld [vmem:[%s2 + $0x24] sm:$0xf]
  %v25 = vld [vmem:[%s2 + $0x28] sm:$0xf]
  %v26 = vld [vmem:[%s2 + $0x2c] sm:$0xf]
  %v27 = vld [vmem:[%s2 + $0x30] sm:$0xf]
  %v28 = vld [vmem:[%s2 + $0x34] sm:$0xf]
  %v29 = vld [vmem:[%s2 + $0x38] sm:$0xf]
  %v30 = vld [vmem:[%s2 + $0x3c] sm:$0xf]
  %v31 = vld [vmem:[%s2 + $0x40] sm:$0xf]
  %v32 = vld [vmem:[%s2 + $0x44] sm:$0xf]
  %v33 = vld [vmem:[%s2 + $0x48] sm:$0xf]
  %v34 = vld [vmem:[%s2 + $0x4c] sm:$0xf]
  %v35 = vld [vmem:[%s2 + $0x50] sm:$0xf]
  %v36 = vunpack.c.l.bf16 %v35
  %v37 = vld [vmem:[%s0] sm:$0xff]
  %v38 = vpack.c.bf16 %v37, %v37
  %v39 = vld [vmem:[%s1] sm:$0xff]
  %v40 = vpack.c.bf16 %v39, %v39
  %vm41 = vcmask 64512
  %v43 = vsel %vm41, %v40, 0
  %vm45 = vcmask 1043456
  %v47 = vsel %vm45, %v17, 0
  %49 = vmatpush.bf16.msra.mxu0 0
  %50 = vmatpush.bf16.msra.mxu0 0
  %51 = vmatpush.bf16.msra.mxu0 0
  %52 = vmatpush.bf16.msra.mxu0 0
  %53 = vmatpush.bf16.msra.mxu0 0
  %54 = vmatpush.bf16.msra.mxu0 0
  %55 = vmatpush.bf16.msra.mxu0 0
  %56 = vmatpush.bf16.msra.mxu0 %v47
  %57 = vmatmul.bf16.gmra.mxu0 %v43
  %v58 = vpop.f32.mrf.mxu0
  %v59 = vadd.f32 0.0, %v58
  %v60 = vpop.f32.mrf.mxu0
  %61 = vdwg.mxu0
  %v64 = vunpack.c.l.b16 %v15
  %v65 = vunpack.c.l.b16 %v16
  %v66 = vpack.c.b16 %v65, %v64
  %vm68 = vcmask 130048
  %v70 = vsel %vm68, %v38, 0
  %72 = vmatpush.bf16.msra.mxu0 0
  %73 = vmatpush.bf16.msra.mxu0 0
  %74 = vmatpush.bf16.msra.mxu0 0
  %75 = vmatpush.bf16.msra.mxu0 0
  %76 = vmatpush.bf16.msra.mxu0 0
  %77 = vmatpush.bf16.msra.mxu0 0
  %78 = vmatpush.bf16.msra.mxu0 0
  %79 = vmatpush.bf16.msra.mxu0 %v66
  %80 = vmatmul.bf16.gmra.mxu0 %v70
  %v81 = vpop.f32.mrf.mxu0
  %v82 = vadd.f32 %v59, %v81
  %v83 = vpop.f32.mrf.mxu0
  %84 = vdwg.mxu0
  %v85 = vperm.slane %v36, 0
  %v86 = vadd.f32 %v82, %v85
  %v87 = vtanh.pop %v86
  %v88 = vpack.c.bf16 %v87, %v87
  %v89 = vperm.slane %v36, 1
  %v98 = vunpack.c.l.b16 %v18
  %v99 = vunpack.c.l.b16 %v19
  %v100 = vunpack.c.l.b16 %v20
  %v101 = vunpack.c.l.b16 %v21
  %v102 = vunpack.c.l.b16 %v22
  %v103 = vunpack.c.l.b16 %v23
  %v104 = vunpack.c.l.b16 %v24
  %v105 = vunpack.c.l.b16 %v25
  %v106 = vpack.c.b16 %v99, %v98
  %v107 = vpack.c.b16 %v101, %v100
  %v108 = vpack.c.b16 %v103, %v102
  %v109 = vpack.c.b16 %v105, %v104
  %vm114 = vcmask 523264
  %v116 = vsel %vm114, %v88, 0
  %118 = vmatpush.bf16.msra.mxu0 0
  %119 = vmatpush.bf16.msra.mxu0 0
  %120 = vmatpush.bf16.msra.mxu0 0
  %121 = vmatpush.bf16.msra.mxu0 0
  %122 = vmatpush.bf16.msra.mxu0 %v109
  %123 = vmatpush.bf16.msra.mxu0 %v108
  %124 = vmatpush.bf16.msra.mxu0 %v107
  %125 = vmatpush.bf16.msra.mxu0 %v106
  %126 = vmatmul.bf16.gmra.mxu0 %v116
  %v127 = vpop.f32.mrf.mxu0
  %v128 = vadd.f32 %v89, %v127
  %v129 = vpop.f32.mrf.mxu0
  %130 = vdwg.mxu0
  %v131 = vtanh.pop %v128
  %v132 = vpack.c.bf16 %v131, %v131
  %v133 = vperm.slane %v36, 2
  %v142 = vunpack.c.l.b16 %v26
  %v143 = vunpack.c.l.b16 %v27
  %v144 = vunpack.c.l.b16 %v28
  %v145 = vunpack.c.l.b16 %v29
  %v146 = vunpack.c.l.b16 %v30
  %v147 = vunpack.c.l.b16 %v31
  %v148 = vunpack.c.l.b16 %v32
  %v149 = vunpack.c.l.b16 %v33
  %v150 = vpack.c.b16 %v143, %v142
  %v151 = vpack.c.b16 %v145, %v144
  %v152 = vpack.c.b16 %v147, %v146
  %v153 = vpack.c.b16 %v149, %v148
  %v159 = vsel %vm114, %v132, 0
  %161 = vmatpush.bf16.msra.mxu0 0
  %162 = vmatpush.bf16.msra.mxu0 0
  %163 = vmatpush.bf16.msra.mxu0 0
  %164 = vmatpush.bf16.msra.mxu0 0
  %165 = vmatpush.bf16.msra.mxu0 %v153
  %166 = vmatpush.bf16.msra.mxu0 %v152
  %167 = vmatpush.bf16.msra.mxu0 %v151
  %168 = vmatpush.bf16.msra.mxu0 %v150
  %169 = vmatmul.bf16.gmra.mxu0 %v159
  %v170 = vpop.f32.mrf.mxu0
  %v171 = vadd.f32 %v133, %v170
  %v172 = vpop.f32.mrf.mxu0
  %173 = vdwg.mxu0
  %v174 = vtanh.pop %v171
  %v175 = vpack.c.bf16 %v174, %v174
  %v177 = vsel %vm114, %v34, 0
  %v180 = vsel %vm114, %v175, 0
  %182 = vmatpush.bf16.xpose.msra.mxu0 0
  %183 = vmatpush.bf16.xpose.msra.mxu0 0
  %184 = vmatpush.bf16.xpose.msra.mxu0 0
  %185 = vmatpush.bf16.xpose.msra.mxu0 0
  %186 = vmatpush.bf16.xpose.msra.mxu0 0
  %187 = vmatpush.bf16.xpose.msra.mxu0 0
  %188 = vmatpush.bf16.xpose.msra.mxu0 0
  %189 = vmatpush.bf16.xpose.msra.mxu0 %v180
  %190 = vmatmul.bf16.gmra.mxu0 %v177
  %v191 = vpop.f32.mrf.mxu0
  %v192 = vadd.f32 0.0, %v191
  %v193 = vpop.f32.mrf.mxu0
  %194 = vdwg.mxu0
  %196 = vset.pattern.permute.xlu0 0
  %197 = vperm.xlu0 %196, %v36
  %v198 = vpop.permute.xlu0 %197
  %v199 = vrot.slane %v198, 3
  %v201 = vadd.f32 %v192, %v199
  %vm202 = vcmask 58368
  %203 = vst.msk [vmem:[%s3] sm:$0x3] %vm202, %v201
  // Predicated region
  $region14: #{twinned_q_forward.1} parent=0 // pred_check
    _
  $region15: #{twinned_q_forward.1} parent=0 // pred_check_branch
    %205 = sbr.rel (0) target = $region17
  $region16: #{twinned_q_forward.1} parent=0 // pred_region
    _
  $region17: #{twinned_q_forward.1} parent=0 // pred_fallthru
    _
  // Predicated region
  $region18: #{twinned_q_forward.1} parent=0 // pred_check
    _
  $region19: #{twinned_q_forward.1} parent=0 // pred_check_branch
    %207 = sbr.rel (0) target = $region21
  $region20: #{twinned_q_forward.1} parent=0 // pred_region
    _
  $region21: #{twinned_q_forward.1} parent=0 // pred_fallthru
    _

</llo_original>
